<compile_context>
chip_gen: v5e
topology: v5e:2x2
jax: 0.10.0
libtpu: 0.0.40
codegen_flags: <defaults>
</compile_context>

<pallas_src>
import jax
import jax.numpy as jnp
from jax.experimental import pallas as pl
from jax.experimental.pallas import tpu as pltpu


# Rough per-grid-step fixed overhead expressed in "equivalent HBM bytes"
# (~0.35 us at ~1 TB/s).  Used only to pick a tile size.
_STEP_OVERHEAD_BYTES = 350_000


def _pick_tile(n: int) -> int:
    """Pick the square tile minimizing (padded lower-tri bytes + step overhead)."""
    best_t, best_cost = 128, None
    for t in (128, 256, 512):
        np_ = max(-(-n // t) * t, t)          # pad up to a multiple of t (>= t)
        k = np_ // t
        n_blocks = k * (k + 1) // 2           # lower-triangular blocks only
        cost = n_blocks * (4 * t * t + _STEP_OVERHEAD_BYTES)
        if best_cost is None or cost < best_cost:
            best_t, best_cost = t, cost
    return best_t


def _make_frob_kernel(t: int):
    """Per-step kernel: (8,128) VALU-only partial sums of sum(M_tile**2)."""
    n_sub = t // 8
    n_lane = t // 128

    def kernel(bi_ref, bj_ref, m_ref, out_ref):
        del bi_ref, bj_ref  # only used by the index_maps
        # Independent accumulator per 128-lane column -> short dependency chains.
        accs = [jnp.zeros((8, 128), jnp.float32) for _ in range(n_lane)]
        for sr in range(n_sub):
            for lc in range(n_lane):
                v = m_ref[sr * 8:(sr + 1) * 8, lc * 128:(lc + 1) * 128]
                accs[lc] = accs[lc] + v * v
        acc = accs[0]
        for lc in range(1, n_lane):
            acc = acc + accs[lc]
        out_ref[...] = acc                    # lane-dense, unmasked (8,128) store

    return kernel


def kullback_distance(A: jax.Array, B: jax.Array) -> jax.Array:
    """0.5 * ( trace(B^{-1} A) - N + log(prod diag chol A / (prod diag chol B + 1e-5) + 1e-5) )"""
    n = A.shape[0]
    assert A.shape == (n, n) and B.shape == (n, n)
    A = A.astype(jnp.float32)
    B = B.astype(jnp.float32)

    # TODO(synk): Cholesky / triangular solve are inherently sequential
    # factorizations with no clean Pallas TPU equivalent; they stay in XLA.
    chol_a = jnp.linalg.cholesky(A)
    chol_b = jnp.linalg.cholesky(B)
    # trace(B^{-1} A) == ||L_b^{-1} L_a||_F^2  (M is lower triangular).
    m = jax.lax.linalg.triangular_solve(chol_b, chol_a, left_side=True, lower=True)

    t = _pick_tile(n)
    np_ = max(-(-n // t) * t, t)
    if np_ != n:
        # Zero padding is exact for the Frobenius sum.
        m = jnp.pad(m, ((0, np_ - n), (0, np_ - n)))
    k = np_ // t

    # Static step -> (block_i, block_j) tables over the lower-triangular blocks.
    pairs = [(i, j) for i in range(k) for j in range(i + 1)]
    num_steps = len(pairs)
    bi_tbl = jnp.asarray([p[0] for p in pairs], dtype=jnp.int32)
    bj_tbl = jnp.asarray([p[1] for p in pairs], dtype=jnp.int32)

    cost = pl.CostEstimate(
        flops=2 * num_steps * t * t,                       # square + accumulate
        transcendentals=0,
        bytes_accessed=4 * num_steps * t * t + 4 * num_steps * 8 * 128,
    )

    partials = pl.pallas_call(
        _make_frob_kernel(t),
        out_shape=jax.ShapeDtypeStruct((num_steps * 8, 128), jnp.float32),
        grid_spec=pltpu.PrefetchScalarGridSpec(
            num_scalar_prefetch=2,
            grid=(num_steps,),
            in_specs=[
                # M tiles, streamed; data-dependent block index from the tables.
                pl.BlockSpec((t, t), lambda s, bi, bj: (bi[s], bj[s])),
            ],
            out_specs=pl.BlockSpec((8, 128), lambda s, bi, bj: (s, 0)),
        ),
        compiler_params=pltpu.CompilerParams(
            dimension_semantics=("parallel",)),            # megacore-shardable
        cost_estimate=cost,
    )(bi_tbl, bj_tbl, m)

    tr = jnp.sum(partials)                                 # trace(B^{-1} A)

    # logdet with the exact epsilon placement of the reference module.  Like
    # torch.diag().prod(), the explicit products can over/underflow in f32 for
    # very large N; kept as-is to preserve the reference semantics.
    logdet = jnp.log(
        jnp.prod(jnp.diagonal(chol_a)) / (jnp.prod(jnp.diagonal(chol_b)) + 1e-5)
        + 1e-5
    )
    return 0.5 * (tr - jnp.float32(n) + logdet)


if __name__ == "__main__":
    key = jax.random.PRNGKey(0)
    k1, k2 = jax.random.split(key)

    N = 8  # small SPD matrices, consistent with the module (square A, B)
    Ma = jax.random.normal(k1, (N, N), dtype=jnp.float32)
    Mb = jax.random.normal(k2, (N, N), dtype=jnp.float32)
    A = Ma @ Ma.T / N + jnp.eye(N, dtype=jnp.float32)
    B = Mb @ Mb.T / N + jnp.eye(N, dtype=jnp.float32)

    out = kullback_distance(A, B)
    out = jax.block_until_ready(out)

    # Pure-JAX reference of the exact PyTorch formula.
    chol_a = jnp.linalg.cholesky(A)
    chol_b = jnp.linalg.cholesky(B)
    logdet = jnp.log(
        jnp.prod(jnp.diag(chol_a)) / (jnp.prod(jnp.diag(chol_b)) + 1e-5) + 1e-5
    )
    ref = 0.5 * (jnp.trace(jnp.linalg.inv(B) @ A) - N + logdet)

    assert jnp.allclose(out, ref, rtol=1e-4, atol=1e-4), (out, ref)
    print("KERNEL_OK")
</pallas_src>

<mosaic_0001>
module attributes {stable_mosaic.version = 11 : i64} {
  func.func @kernel(%arg0: i32, %arg1: memref<1xi32, #tpu.memory_space<smem>>, %arg2: memref<1xi32, #tpu.memory_space<smem>>, %arg3: memref<128x128xf32, #tpu.memory_space<vmem>>, %arg4: memref<8x128xf32, #tpu.memory_space<vmem>>) attributes {dimension_semantics = [#tpu.dimension_semantics<parallel>], iteration_bounds = array<i64: 1>, scalar_prefetch = 2 : i64, scratch_operands = 0 : i64, tpu.core_type = #tpu.core_type<tc>, window_params = [{transform_indices = @transform_0, window_bounds = array<i64: 128, 128>}, {transform_indices = @transform_1, window_bounds = array<i64: 8, 128>}]} {
    %cst = arith.constant 0.000000e+00 : f32
    %0 = vector.broadcast %cst : f32 to vector<8x128xf32>
    %c0 = arith.constant 0 : index
    %c0_0 = arith.constant 0 : index
    %1 = vector.load %arg3[%c0, %c0_0] : memref<128x128xf32, #tpu.memory_space<vmem>>, vector<8x128xf32>
    %2 = arith.mulf %1, %1 : vector<8x128xf32>
    %3 = arith.addf %0, %2 : vector<8x128xf32>
    %c8 = arith.constant 8 : index
    %c0_1 = arith.constant 0 : index
    %4 = vector.load %arg3[%c8, %c0_1] : memref<128x128xf32, #tpu.memory_space<vmem>>, vector<8x128xf32>
    %5 = arith.mulf %4, %4 : vector<8x128xf32>
    %6 = arith.addf %3, %5 : vector<8x128xf32>
    %c16 = arith.constant 16 : index
    %c0_2 = arith.constant 0 : index
    %7 = vector.load %arg3[%c16, %c0_2] : memref<128x128xf32, #tpu.memory_space<vmem>>, vector<8x128xf32>
    %8 = arith.mulf %7, %7 : vector<8x128xf32>
    %9 = arith.addf %6, %8 : vector<8x128xf32>
    %c24 = arith.constant 24 : index
    %c0_3 = arith.constant 0 : index
    %10 = vector.load %arg3[%c24, %c0_3] : memref<128x128xf32, #tpu.memory_space<vmem>>, vector<8x128xf32>
    %11 = arith.mulf %10, %10 : vector<8x128xf32>
    %12 = arith.addf %9, %11 : vector<8x128xf32>
    %c32 = arith.constant 32 : index
    %c0_4 = arith.constant 0 : index
    %13 = vector.load %arg3[%c32, %c0_4] : memref<128x128xf32, #tpu.memory_space<vmem>>, vector<8x128xf32>
    %14 = arith.mulf %13, %13 : vector<8x128xf32>
    %15 = arith.addf %12, %14 : vector<8x128xf32>
    %c40 = arith.constant 40 : index
    %c0_5 = arith.constant 0 : index
    %16 = vector.load %arg3[%c40, %c0_5] : memref<128x128xf32, #tpu.memory_space<vmem>>, vector<8x128xf32>
    %17 = arith.mulf %16, %16 : vector<8x128xf32>
    %18 = arith.addf %15, %17 : vector<8x128xf32>
    %c48 = arith.constant 48 : index
    %c0_6 = arith.constant 0 : index
    %19 = vector.load %arg3[%c48, %c0_6] : memref<128x128xf32, #tpu.memory_space<vmem>>, vector<8x128xf32>
    %20 = arith.mulf %19, %19 : vector<8x128xf32>
    %21 = arith.addf %18, %20 : vector<8x128xf32>
    %c56 = arith.constant 56 : index
    %c0_7 = arith.constant 0 : index
    %22 = vector.load %arg3[%c56, %c0_7] : memref<128x128xf32, #tpu.memory_space<vmem>>, vector<8x128xf32>
    %23 = arith.mulf %22, %22 : vector<8x128xf32>
    %24 = arith.addf %21, %23 : vector<8x128xf32>
    %c64 = arith.constant 64 : index
    %c0_8 = arith.constant 0 : index
    %25 = vector.load %arg3[%c64, %c0_8] : memref<128x128xf32, #tpu.memory_space<vmem>>, vector<8x128xf32>
    %26 = arith.mulf %25, %25 : vector<8x128xf32>
    %27 = arith.addf %24, %26 : vector<8x128xf32>
    %c72 = arith.constant 72 : index
    %c0_9 = arith.constant 0 : index
    %28 = vector.load %arg3[%c72, %c0_9] : memref<128x128xf32, #tpu.memory_space<vmem>>, vector<8x128xf32>
    %29 = arith.mulf %28, %28 : vector<8x128xf32>
    %30 = arith.addf %27, %29 : vector<8x128xf32>
    %c80 = arith.constant 80 : index
    %c0_10 = arith.constant 0 : index
    %31 = vector.load %arg3[%c80, %c0_10] : memref<128x128xf32, #tpu.memory_space<vmem>>, vector<8x128xf32>
    %32 = arith.mulf %31, %31 : vector<8x128xf32>
    %33 = arith.addf %30, %32 : vector<8x128xf32>
    %c88 = arith.constant 88 : index
    %c0_11 = arith.constant 0 : index
    %34 = vector.load %arg3[%c88, %c0_11] : memref<128x128xf32, #tpu.memory_space<vmem>>, vector<8x128xf32>
    %35 = arith.mulf %34, %34 : vector<8x128xf32>
    %36 = arith.addf %33, %35 : vector<8x128xf32>
    %c96 = arith.constant 96 : index
    %c0_12 = arith.constant 0 : index
    %37 = vector.load %arg3[%c96, %c0_12] : memref<128x128xf32, #tpu.memory_space<vmem>>, vector<8x128xf32>
    %38 = arith.mulf %37, %37 : vector<8x128xf32>
    %39 = arith.addf %36, %38 : vector<8x128xf32>
    %c104 = arith.constant 104 : index
    %c0_13 = arith.constant 0 : index
    %40 = vector.load %arg3[%c104, %c0_13] : memref<128x128xf32, #tpu.memory_space<vmem>>, vector<8x128xf32>
    %41 = arith.mulf %40, %40 : vector<8x128xf32>
    %42 = arith.addf %39, %41 : vector<8x128xf32>
    %c112 = arith.constant 112 : index
    %c0_14 = arith.constant 0 : index
    %43 = vector.load %arg3[%c112, %c0_14] : memref<128x128xf32, #tpu.memory_space<vmem>>, vector<8x128xf32>
    %44 = arith.mulf %43, %43 : vector<8x128xf32>
    %45 = arith.addf %42, %44 : vector<8x128xf32>
    %c120 = arith.constant 120 : index
    %c0_15 = arith.constant 0 : index
    %46 = vector.load %arg3[%c120, %c0_15] : memref<128x128xf32, #tpu.memory_space<vmem>>, vector<8x128xf32>
    %47 = arith.mulf %46, %46 : vector<8x128xf32>
    %48 = arith.addf %45, %47 : vector<8x128xf32>
    %c0_16 = arith.constant 0 : index
    %c0_17 = arith.constant 0 : index
    %49 = vector.load %arg4[%c0_16, %c0_17] : memref<8x128xf32, #tpu.memory_space<vmem>>, vector<8x128xf32>
    tpu.vector_store %arg4[%c0_16, %c0_17], %48 {strides = array<i32>} : memref<8x128xf32, #tpu.memory_space<vmem>>, vector<8x128xf32>,
    return
  }
  func.func @transform_0(%arg0: i32, %arg1: memref<1xi32, #tpu.memory_space<smem>>, %arg2: memref<1xi32, #tpu.memory_space<smem>>) -> (i32, i32) {
    %0 = arith.index_cast %arg0 : i32 to index
    %1 = memref.load %arg1[%0] : memref<1xi32, #tpu.memory_space<smem>>
    %2 = arith.index_cast %arg0 : i32 to index
    %3 = memref.load %arg2[%2] : memref<1xi32, #tpu.memory_space<smem>>
    %c0_i32 = arith.constant 0 : i32
    return %1, %3 : i32, i32
  }
  func.func @transform_1(%arg0: i32, %arg1: memref<1xi32, #tpu.memory_space<smem>>, %arg2: memref<1xi32, #tpu.memory_space<smem>>) -> (i32, i32) {
    %c0_i32 = arith.constant 0 : i32
    %c0_i32_0 = arith.constant 0 : i32
    return %arg0, %c0_i32 : i32, i32
  }
}

</mosaic_0001>

<llo_original>
// kernel: tpu_custom_call.1
$region0: #{tpu_custom_call.1}
  #allocation0 [shape = 'u32[]', space=smem, size = 0x4, offset = 0x4, fixed_abs, tag = 'smem constant byte address 0x4 - core index']
  #allocation1 [shape = 'u32[72,128]{1,0:T(1,128)}', space=vmem, size = 0x9000, scoped, tag = 'internal scratch']
  #allocation2 [shape = 's32[1]{0}', space=sflag, size = 0x4, scoped, tag = 'scoped memory for tpu_custom_call.1']
  #allocation3 [shape = 's32[1]{0:T(128)S(6)}', space=smem, size = 0x200, scoped, tag = 'prefetched SMEM operand 0']
  #allocation4 [shape = 's32[1]{0:T(128)S(6)}', space=smem, size = 0x200, scoped, tag = 'prefetched SMEM operand 1']
  %s0 = inlined_call_operand.<no memory space> [shape: s32[1], index: 0, kind: input, shape index: {}]
  %s1 = inlined_call_operand.<no memory space> [shape: s32[1], index: 1, kind: input, shape index: {}]
  %s2 = inlined_call_operand.hbm [shape: f32[128,128], index: 2, kind: input, shape index: {}]
  %s3 = inlined_call_operand.hbm [shape: f32[8,128], index: 3, kind: output, shape index: {}]
  %s4 = sld [smem:[#allocation0]]
  $region18: #{tpu_custom_call.1} parent=0
    _
  %s6 = ssub.s32 1, %s4
  %s7 = scalar_select 0, %s6, %s4
  %8 = sst [smem:[#allocation3]] %s0
  %9 = sst [smem:[#allocation4]] %s1
  $region1: #{tpu_custom_call.1} parent=0
    #allocation5 [shape = 'u8[65536]{0}', space=vmem, size = 0x10000, scoped, tag = 'input window, operand 2, single buffered']
    #allocation6 [shape = 's32[1]{0}', space=sflag, size = 0x4, scoped, tag = 'scoped memory for tpu_custom_call.1']
    #allocation7 [shape = 's32[1]{0}', space=sflag, size = 0x4, scoped, tag = 'scoped memory for tpu_custom_call.1']
    #allocation8 [shape = 'u8[4096]{0}', space=vmem, size = 0x1000, scoped, tag = 'output window, operand 0, single buffered']
    %10 = vsyncpa [#allocation6], 0
    %11 = vsyncpa [#allocation7], 0
    // Predicated region
    $region2: #{tpu_custom_call.1} parent=1 // pred_check
      _
    $region3: #{tpu_custom_call.1} parent=1 // pred_check_branch
      %13 = sbr.rel (0) target = $region5
    $region4: #{tpu_custom_call.1} parent=1 // pred_region
      %s14 = sld [smem:[#allocation3]]
      %s15 = sld [smem:[#allocation4]]
      %s16 = smul.u32 16, %s14
      %18 = vsyncadd [#allocation6], 0
      %s19 = sadd.s32 %s15, %s16
      %s20 = smul.addr %s19, 8
      %s21 = scalar_lea.hbm %s2, %s20
      %s22 = sshll.u32 %s21, 4
      %s23 = int_to_ptr.hbm [resolvable:$true] %s22
      %s24 = sshll.u32 [#allocation5], 4
      %s25 = int_to_ptr.vmem [resolvable:$true] %s24
      %30 = dma.hbm_to_vmem [thread:$0]  %s23, 2048, %s25, [#allocation6], 128, 128, 8
    $region5: #{tpu_custom_call.1} parent=1 // pred_fallthru
      _
    // Predicated region
    $region6: #{tpu_custom_call.1} parent=1 // pred_check
      _
    $region7: #{tpu_custom_call.1} parent=1 // pred_check_branch
      %32 = sbr.rel (0) target = $region9
    $region8: #{tpu_custom_call.1} parent=1 // pred_region
      %34 = dma.done [#allocation6], 2048
    $region9: #{tpu_custom_call.1} parent=1 // pred_fallthru
      _
    %s35 = sld [smem:[#allocation3]]
    %s36 = sld [smem:[#allocation4]]
    %s37 = smul.u32 16, %s35
    %v38 = vld [vmem:[#allocation5] sm:$0xff]
    %v39 = vmul.f32 %v38, %v38
    %v40 = vadd.f32 %v39, 0.0
    %v41 = vld [vmem:[#allocation5 + $0x8] sm:$0xff]
    %v42 = vmul.f32 %v41, %v41
    %v43 = vadd.f32 %v40, %v42
    %v44 = vld [vmem:[#allocation5 + $0x10] sm:$0xff]
    %v45 = vmul.f32 %v44, %v44
    %v46 = vadd.f32 %v43, %v45
    %v47 = vld [vmem:[#allocation5 + $0x18] sm:$0xff]
    %v48 = vmul.f32 %v47, %v47
    %v49 = vadd.f32 %v46, %v48
    %v50 = vld [vmem:[#allocation5 + $0x20] sm:$0xff]
    %v51 = vmul.f32 %v50, %v50
    %v52 = vadd.f32 %v49, %v51
    %v53 = vld [vmem:[#allocation5 + $0x28] sm:$0xff]
    %v54 = vmul.f32 %v53, %v53
    %v55 = vadd.f32 %v52, %v54
    %v56 = vld [vmem:[#allocation5 + $0x30] sm:$0xff]
    %v57 = vmul.f32 %v56, %v56
    %v58 = vadd.f32 %v55, %v57
    %v59 = vld [vmem:[#allocation5 + $0x38] sm:$0xff]
    %v60 = vmul.f32 %v59, %v59
    %v61 = vadd.f32 %v58, %v60
    %v62 = vld [vmem:[#allocation5 + $0x40] sm:$0xff]
    %v63 = vmul.f32 %v62, %v62
    %v64 = vadd.f32 %v61, %v63
    %v65 = vld [vmem:[#allocation5 + $0x48] sm:$0xff]
    %v66 = vmul.f32 %v65, %v65
    %v67 = vadd.f32 %v64, %v66
    %v68 = vld [vmem:[#allocation5 + $0x50] sm:$0xff]
    %v69 = vmul.f32 %v68, %v68
    %v70 = vadd.f32 %v67, %v69
    %v71 = vld [vmem:[#allocation5 + $0x58] sm:$0xff]
    %v72 = vmul.f32 %v71, %v71
    %v73 = vadd.f32 %v70, %v72
    %v74 = vld [vmem:[#allocation5 + $0x60] sm:$0xff]
    %v75 = vmul.f32 %v74, %v74
    %v76 = vadd.f32 %v73, %v75
    %v77 = vld [vmem:[#allocation5 + $0x68] sm:$0xff]
    %v78 = vmul.f32 %v77, %v77
    %v79 = vadd.f32 %v76, %v78
    %v80 = vld [vmem:[#allocation5 + $0x70] sm:$0xff]
    %v81 = vmul.f32 %v80, %v80
    %v82 = vadd.f32 %v79, %v81
    %v83 = vld [vmem:[#allocation5 + $0x78] sm:$0xff]
    %v84 = vmul.f32 %v83, %v83
    %v85 = vadd.f32 %v82, %v84
    %86 = vst [vmem:[#allocation8] sm:$0xff] %v85
    // Predicated region
    $region10: #{tpu_custom_call.1} parent=1 // pred_check
      _
    $region11: #{tpu_custom_call.1} parent=1 // pred_check_branch
      %88 = sbr.rel (0) target = $region13
    $region12: #{tpu_custom_call.1} parent=1 // pred_region
      %90 = vsyncadd [#allocation7], 0
      %s92 = sshll.u32 [#allocation8], 4
      %s93 = int_to_ptr.vmem [resolvable:$true] %s92
      %s94 = sshll.u32 %s3, 4
      %s95 = int_to_ptr.hbm [resolvable:$true] %s94
      %97 = dma.vmem_to_hbm [thread:$0]  %s93, 128, %s95, [#allocation7]
    $region13: #{tpu_custom_call.1} parent=1 // pred_fallthru
      _
    // Predicated region
    $region14: #{tpu_custom_call.1} parent=1 // pred_check
      _
    $region15: #{tpu_custom_call.1} parent=1 // pred_check_branch
      %99 = sbr.rel (0) target = $region17
    $region16: #{tpu_custom_call.1} parent=1 // pred_region
      %101 = dma.done [#allocation7], 128
    $region17: #{tpu_custom_call.1} parent=1 // pred_fallthru
      _
    %102 = vsyncpa [#allocation6], 1
    %103 = vsyncpa [#allocation7], 1

</llo_original>
